<compile_context>
chip_gen: v6e
topology: v6e:2x2x1
jax: 0.10.0
libtpu: 0.0.40
codegen_flags: <defaults>
</compile_context>

<pallas_src>
import functools
import math

import jax
import jax.numpy as jnp
from jax.experimental import pallas as pl
from jax.experimental.pallas import tpu as pltpu


def _round_up(v, m):
    return ((v + m - 1) // m) * m


def _cdiv(a, b):
    return -(-a // b)


def _pick_tb(batch, cap):
    """Bucketed batch tile: pow2 below the cap, 128-granular above it."""
    b = _round_up(batch, 8)
    if b <= cap:
        tb = 8
        while tb < b:
            tb *= 2
        return tb
    n_tiles = _cdiv(batch, cap)
    return _round_up(_cdiv(batch, n_tiles), 128)


def _largest_tile(dim_padded, cap, min_tiles=1):
    """Largest multiple of 128 that divides dim_padded, <= cap, giving >= min_tiles tiles."""
    best = 128
    t = 128
    limit = min(cap, dim_padded)
    while t <= limit:
        if dim_padded % t == 0 and dim_padded // t >= min_tiles:
            best = t
        t += 128
    return best


def _rnn_cell_kernel_inplace(xh_ref, w_ref, b_ref, out_ref, *, nonlinearity):
    # f32 output: out_ref is resident across the K axis -> accumulate in place.
    k = pl.program_id(2)

    @pl.when(k == 0)
    def _():
        out_ref[...] = jnp.zeros_like(out_ref)

    out_ref[...] += jnp.dot(xh_ref[...], w_ref[...],
                            preferred_element_type=jnp.float32)

    @pl.when(k == pl.num_programs(2) - 1)
    def _():
        pre = out_ref[...] + b_ref[...]          # bias added exactly once
        if nonlinearity == "tanh":
            out_ref[...] = jnp.tanh(pre)         # EUP
        else:                                    # 'relu'
            out_ref[...] = jnp.maximum(pre, 0.0)


def _rnn_cell_kernel_scratch(xh_ref, w_ref, b_ref, out_ref, acc_ref, *, nonlinearity):
    # Low-precision output: accumulate in an f32 scratch, cast in the epilogue.
    k = pl.program_id(2)

    @pl.when(k == 0)
    def _():
        acc_ref[...] = jnp.zeros_like(acc_ref)

    acc_ref[...] += jnp.dot(xh_ref[...], w_ref[...],
                            preferred_element_type=jnp.float32)

    @pl.when(k == pl.num_programs(2) - 1)
    def _():
        pre = acc_ref[...] + b_ref[...]
        act = jnp.tanh(pre) if nonlinearity == "tanh" else jnp.maximum(pre, 0.0)
        out_ref[...] = act.astype(out_ref.dtype)


def _rnn_cell_matmul(xh, w, b, *, tb, th, tk, nonlinearity, out_dtype):
    """Padded fused matmul + bias + nonlinearity. Shapes already tile-aligned."""
    Bp, Kp = xh.shape
    Kp2, Hp = w.shape
    assert Kp == Kp2 and Bp % tb == 0 and Hp % th == 0 and Kp % tk == 0
    grid = (Bp // tb, Hp // th, Kp // tk)

    f32_out = jnp.dtype(out_dtype) == jnp.dtype(jnp.float32)
    if f32_out:
        kernel = functools.partial(_rnn_cell_kernel_inplace,
                                   nonlinearity=nonlinearity)
        scratch_shapes = []
    else:
        kernel = functools.partial(_rnn_cell_kernel_scratch,
                                   nonlinearity=nonlinearity)
        scratch_shapes = [pltpu.VMEM((tb, th), jnp.float32)]

    # Double-buffered tile footprint (inputs, bias, output) + scratch, with
    # margin; clamped so it always fits v7x's 64 MiB physical VMEM.
    footprint = 2 * (tb * tk * xh.dtype.itemsize
                     + tk * th * w.dtype.itemsize
                     + th * b.dtype.itemsize
                     + tb * th * jnp.dtype(out_dtype).itemsize)
    if not f32_out:
        footprint += tb * th * 4
    vmem_limit = min(max(int(footprint * 1.25) + (2 << 20), 8 << 20), 48 << 20)

    return pl.pallas_call(
        kernel,
        out_shape=jax.ShapeDtypeStruct((Bp, Hp), out_dtype),
        grid_spec=pltpu.PrefetchScalarGridSpec(
            num_scalar_prefetch=0,
            grid=grid,
            in_specs=[
                pl.BlockSpec((tb, tk), lambda i, j, k: (i, k)),
                pl.BlockSpec((tk, th), lambda i, j, k: (k, j)),
                pl.BlockSpec((1, th), lambda i, j, k: (0, j)),
            ],
            out_specs=pl.BlockSpec((tb, th), lambda i, j, k: (i, j)),
            scratch_shapes=scratch_shapes,
        ),
        compiler_params=pltpu.CompilerParams(
            dimension_semantics=("parallel", "parallel", "arbitrary"),
            vmem_limit_bytes=vmem_limit,
        ),
    )(xh, w, b)


@functools.partial(jax.jit, static_argnames=("tb", "th", "tk", "nonlinearity"))
def _rnn_cell_forward(x, hx, w_pad, b_pad, *, tb, th, tk, nonlinearity):
    """Concat + cast + pad activations, run the fused kernel, slice back."""
    B, I = x.shape
    H = hx.shape[1]
    K = I + H
    Kp, Hp = w_pad.shape
    Bp = _round_up(B, tb)
    out_dtype = x.dtype
    xh = jnp.concatenate([x, hx], axis=1).astype(w_pad.dtype)   # (B, I+H) bf16
    xh = jnp.pad(xh, ((0, Bp - B), (0, Kp - K)))                # zero-pad: no-op in dot
    out = _rnn_cell_matmul(xh, w_pad, b_pad,
                           tb=tb, th=th, tk=tk,
                           nonlinearity=nonlinearity, out_dtype=out_dtype)
    return out[:B, :H]


class RNNCellPallas:
    """Mirror of torch.nn.RNNCell(input_size, hidden_size, bias, nonlinearity)."""

    _MAX_TB = 1024   # batch tile cap
    _MAX_TH = 1024   # hidden (lane) tile cap, multiple of 128
    _MAX_TK = 1024   # reduction tile cap, multiple of 128

    def __init__(self, input_size, hidden_size, key, bias=True,
                 nonlinearity="tanh", dtype=jnp.float32,
                 param_dtype=jnp.bfloat16):
        if nonlinearity not in ("tanh", "relu"):
            raise RuntimeError("Unknown nonlinearity: {}".format(nonlinearity))
        self.input_size = input_size
        self.hidden_size = hidden_size
        self.bias = bias
        self.nonlinearity = nonlinearity

        stdv = 1.0 / math.sqrt(hidden_size)
        k1, k2, k3, k4 = jax.random.split(key, 4)
        self.weight_ih = jax.random.uniform(
            k1, (hidden_size, input_size), dtype, minval=-stdv, maxval=stdv)
        self.weight_hh = jax.random.uniform(
            k2, (hidden_size, hidden_size), dtype, minval=-stdv, maxval=stdv)
        if bias:
            self.bias_ih = jax.random.uniform(
                k3, (hidden_size,), dtype, minval=-stdv, maxval=stdv)
            self.bias_hh = jax.random.uniform(
                k4, (hidden_size,), dtype, minval=-stdv, maxval=stdv)
        else:
            self.bias_ih = None
            self.bias_hh = None

        # --- one-time parameter prep: concat, pad to 128 multiples, bf16 ---
        K = input_size + hidden_size
        Kp = _round_up(K, 128)
        Hp = _round_up(hidden_size, 128)

        w_cat = jnp.concatenate([self.weight_ih.T, self.weight_hh.T], axis=0)  # (K, H)
        w_cat = jnp.pad(w_cat, ((0, Kp - K), (0, Hp - hidden_size)))
        self._w_pad = w_cat.astype(param_dtype)                                # (Kp, Hp)

        if bias:
            b = (self.bias_ih + self.bias_hh).reshape(1, hidden_size)
        else:
            b = jnp.zeros((1, hidden_size), dtype)
        self._b_pad = jnp.pad(b, ((0, 0), (0, Hp - hidden_size))).astype(jnp.float32)

    def __call__(self, x, hx=None):
        if x.shape[1] != self.input_size:
            raise RuntimeError("input has inconsistent input_size: got {}, "
                               "expected {}".format(x.shape[1], self.input_size))
        if hx is None:
            hx = jnp.zeros((x.shape[0], self.hidden_size), dtype=x.dtype)
        if hx.shape != (x.shape[0], self.hidden_size):
            raise RuntimeError("hidden has inconsistent shape")

        B = x.shape[0]
        Kp, Hp = self._w_pad.shape

        tb = _pick_tb(B, self._MAX_TB)
        n_batch_tiles = _round_up(B, tb) // tb
        # When one batch tile covers the whole batch, split the hidden axis
        # (if Hp allows) so there are >=2 parallel output tiles (v7x: 2 TCs).
        min_h_tiles = 2 if n_batch_tiles == 1 else 1
        th = _largest_tile(Hp, self._MAX_TH, min_tiles=min_h_tiles)
        tk = _largest_tile(Kp, self._MAX_TK, min_tiles=1)

        return _rnn_cell_forward(x, hx, self._w_pad, self._b_pad,
                                 tb=tb, th=th, tk=tk,
                                 nonlinearity=self.nonlinearity)


if __name__ == "__main__":
    key = jax.random.PRNGKey(0)
    k_params, k_x, k_h, k_params2, k_x2, k_h2 = jax.random.split(key, 6)

    # --- small tanh cell, aligned-ish shapes ---
    batch, input_size, hidden_size = 8, 16, 32
    cell = RNNCellPallas(input_size, hidden_size, k_params)

    x = jax.random.normal(k_x, (batch, input_size), jnp.float32)
    hx = jax.random.normal(k_h, (batch, hidden_size), jnp.float32)

    out = jax.block_until_ready(cell(x, hx))

    # Pure-JAX f32 reference (same math as torch rnn_tanh_cell); kernel uses
    # bf16 weights with f32 accumulation -> loose tolerance.
    ref = jnp.tanh(x @ cell.weight_ih.T + cell.bias_ih
                   + hx @ cell.weight_hh.T + cell.bias_hh)
    assert out.shape == (batch, hidden_size)
    assert jnp.allclose(out, ref, atol=2e-2, rtol=2e-2)

    # default-hidden (hx=None) path, like torch forward()
    out0 = jax.block_until_ready(cell(x))
    ref0 = jnp.tanh(x @ cell.weight_ih.T + cell.bias_ih + cell.bias_hh)
    assert jnp.allclose(out0, ref0, atol=2e-2, rtol=2e-2)

    # --- relu cell with odd, non-128-aligned sizes (exercises padding/tiling) ---
    batch2, input_size2, hidden_size2 = 5, 24, 200
    cell2 = RNNCellPallas(input_size2, hidden_size2, k_params2,
                          nonlinearity="relu")
    x2 = jax.random.normal(k_x2, (batch2, input_size2), jnp.float32)
    hx2 = jax.random.normal(k_h2, (batch2, hidden_size2), jnp.float32)
    out2 = jax.block_until_ready(cell2(x2, hx2))
    ref2 = jnp.maximum(x2 @ cell2.weight_ih.T + cell2.bias_ih
                       + hx2 @ cell2.weight_hh.T + cell2.bias_hh, 0.0)
    assert out2.shape == (batch2, hidden_size2)
    assert jnp.allclose(out2, ref2, atol=2e-2, rtol=2e-2)

    print("KERNEL_OK")
</pallas_src>

<mosaic_0001>
module attributes {stable_mosaic.version = 11 : i64} {
  func.func @_rnn_cell_kernel_inplace(%arg0: i32, %arg1: i32, %arg2: i32, %arg3: memref<8x128xbf16, #tpu.memory_space<vmem>>, %arg4: memref<128x128xbf16, #tpu.memory_space<vmem>>, %arg5: memref<1x128xf32, #tpu.memory_space<vmem>>, %arg6: memref<8x128xf32, #tpu.memory_space<vmem>>) attributes {dimension_semantics = [#tpu.dimension_semantics<parallel>, #tpu.dimension_semantics<parallel>, #tpu.dimension_semantics<arbitrary>], iteration_bounds = array<i64: 1, 1, 1>, scalar_prefetch = 0 : i64, scratch_operands = 0 : i64, tpu.core_type = #tpu.core_type<tc>, window_params = [{transform_indices = @transform_0, window_bounds = array<i64: 8, 128>}, {transform_indices = @transform_1, window_bounds = array<i64: 128, 128>}, {transform_indices = @transform_2, window_bounds = array<i64: 1, 128>}, {transform_indices = @transform_3, window_bounds = array<i64: 8, 128>}]} {
    %c0_i32 = arith.constant 0 : i32
    %0 = arith.cmpi eq, %arg2, %c0_i32 : i32
    %1 = arith.extui %0 : i1 to i32
    %c0_i32_0 = arith.constant 0 : i32
    %2 = arith.cmpi ne, %1, %c0_i32_0 : i32
    scf.if %2 {
      %cst_10 = arith.constant 0.000000e+00 : f32
      %12 = vector.broadcast %cst_10 : f32 to vector<8x128xf32>
      %c0_11 = arith.constant 0 : index
      %c0_12 = arith.constant 0 : index
      %13 = vector.load %arg6[%c0_11, %c0_12] : memref<8x128xf32, #tpu.memory_space<vmem>>, vector<8x128xf32>
      tpu.vector_store %arg6[%c0_11, %c0_12], %12 {strides = array<i32>} : memref<8x128xf32, #tpu.memory_space<vmem>>, vector<8x128xf32>,
    } else {
    }
    %c0 = arith.constant 0 : index
    %c0_1 = arith.constant 0 : index
    %3 = vector.load %arg6[%c0, %c0_1] : memref<8x128xf32, #tpu.memory_space<vmem>>, vector<8x128xf32>
    %c0_2 = arith.constant 0 : index
    %c0_3 = arith.constant 0 : index
    %4 = vector.load %arg3[%c0_2, %c0_3] : memref<8x128xbf16, #tpu.memory_space<vmem>>, vector<8x128xbf16>
    %c0_4 = arith.constant 0 : index
    %c0_5 = arith.constant 0 : index
    %5 = vector.load %arg4[%c0_4, %c0_5] : memref<128x128xbf16, #tpu.memory_space<vmem>>, vector<128x128xbf16>
    %cst = arith.constant dense<0.000000e+00> : vector<8x128xf32>
    %6 = tpu.matmul %4, %5, %cst {dimension_numbers = #tpu.dot_dimension_numbers<[1], [0], [0], [1], [0, 0, 1, 1], [], []>} : vector<8x128xbf16>, vector<128x128xbf16>, vector<8x128xf32> -> vector<8x128xf32>
    %7 = arith.addf %3, %6 : vector<8x128xf32>
    %c0_6 = arith.constant 0 : index
    %c0_7 = arith.constant 0 : index
    %8 = vector.load %arg6[%c0_6, %c0_7] : memref<8x128xf32, #tpu.memory_space<vmem>>, vector<8x128xf32>
    tpu.vector_store %arg6[%c0_6, %c0_7], %7 {strides = array<i32>} : memref<8x128xf32, #tpu.memory_space<vmem>>, vector<8x128xf32>,
    %c0_i32_8 = arith.constant 0 : i32
    %9 = arith.cmpi eq, %arg2, %c0_i32_8 : i32
    %10 = arith.extui %9 : i1 to i32
    %c0_i32_9 = arith.constant 0 : i32
    %11 = arith.cmpi ne, %10, %c0_i32_9 : i32
    scf.if %11 {
      %c0_10 = arith.constant 0 : index
      %c0_11 = arith.constant 0 : index
      %12 = vector.load %arg6[%c0_10, %c0_11] : memref<8x128xf32, #tpu.memory_space<vmem>>, vector<8x128xf32>
      %c0_12 = arith.constant 0 : index
      %c0_13 = arith.constant 0 : index
      %13 = vector.load %arg5[%c0_12, %c0_13] : memref<1x128xf32, #tpu.memory_space<vmem>>, vector<1x128xf32>
      %14 = vector.broadcast %13 : vector<1x128xf32> to vector<8x128xf32>
      %15 = arith.addf %12, %14 : vector<8x128xf32>
      %16 = math.tanh %15 : vector<8x128xf32>
      %c0_14 = arith.constant 0 : index
      %c0_15 = arith.constant 0 : index
      %17 = vector.load %arg6[%c0_14, %c0_15] : memref<8x128xf32, #tpu.memory_space<vmem>>, vector<8x128xf32>
      tpu.vector_store %arg6[%c0_14, %c0_15], %16 {strides = array<i32>} : memref<8x128xf32, #tpu.memory_space<vmem>>, vector<8x128xf32>,
    } else {
    }
    return
  }
  func.func @transform_0(%arg0: i32, %arg1: i32, %arg2: i32) -> (i32, i32) {
    %c0_i32 = arith.constant 0 : i32
    return %arg0, %arg2 : i32, i32
  }
  func.func @transform_1(%arg0: i32, %arg1: i32, %arg2: i32) -> (i32, i32) {
    %c0_i32 = arith.constant 0 : i32
    return %arg2, %arg1 : i32, i32
  }
  func.func @transform_2(%arg0: i32, %arg1: i32, %arg2: i32) -> (i32, i32) {
    %c0_i32 = arith.constant 0 : i32
    %c0_i32_0 = arith.constant 0 : i32
    return %c0_i32, %arg1 : i32, i32
  }
  func.func @transform_3(%arg0: i32, %arg1: i32, %arg2: i32) -> (i32, i32) {
    %c0_i32 = arith.constant 0 : i32
    return %arg0, %arg1 : i32, i32
  }
}

</mosaic_0001>

<llo_original>
// kernel: _rnn_cell_forward.1
$region0: #{_rnn_cell_forward.1}
  #allocation0 [shape = 'u32[]', space=smem, size = 0x4, offset = 0x4, fixed_abs, tag = 'smem constant byte address 0x4 - core index']
  #allocation1 [shape = 'u32[144,128]{1,0:T(1,128)}', space=vmem, size = 0x12000, scoped, tag = 'internal scratch']
  %s0 = inlined_call_operand.vmem [shape: bf16[8,128], index: 0, kind: input, shape index: {}]
  %s1 = inlined_call_operand.hbm [shape: bf16[128,128], index: 1, kind: input, shape index: {}]
  %s2 = inlined_call_operand.vmem [shape: f32[1,128], index: 2, kind: input, shape index: {}]
  %s3 = inlined_call_operand.hbm [shape: f32[8,128], index: 3, kind: output, shape index: {}]
  %s4 = sld [smem:[#allocation0]]
  $region34: #{_rnn_cell_forward.1} parent=0
    _
  %s6 = ssub.s32 1, %s4
  %s7 = scalar_select 0, %s6, %s4
  $region1: #{_rnn_cell_forward.1} parent=0
    #allocation2 [shape = 'u8[32768]{0}', space=vmem, size = 0x8000, scoped, tag = 'input window, operand 1, single buffered']
    #allocation3 [shape = 's32[1]{0}', space=sflag, size = 0x4, scoped, tag = 'scoped memory for _rnn_cell_forward.1']
    #allocation4 [shape = 's32[1]{0}', space=sflag, size = 0x4, scoped, tag = 'scoped memory for _rnn_cell_forward.1']
    #allocation5 [shape = 'u8[4096]{0}', space=vmem, size = 0x1000, scoped, tag = 'output window, operand 0, single buffered']
    %8 = vsyncpa [#allocation3], 0
    %9 = vsyncpa [#allocation4], 0
    // Predicated region
    $region2: #{_rnn_cell_forward.1} parent=1 // pred_check
      _
    $region3: #{_rnn_cell_forward.1} parent=1 // pred_check_branch
      %11 = sbr.rel (0) target = $region5
    $region4: #{_rnn_cell_forward.1} parent=1 // pred_region
      _
    $region5: #{_rnn_cell_forward.1} parent=1 // pred_fallthru
      _
    // Predicated region
    $region6: #{_rnn_cell_forward.1} parent=1 // pred_check
      _
    $region7: #{_rnn_cell_forward.1} parent=1 // pred_check_branch
      %13 = sbr.rel (0) target = $region9
    $region8: #{_rnn_cell_forward.1} parent=1 // pred_region
      %s15 = ssub.s32 1024, 1024
      %16 = vsyncadd [#allocation3], %s15
      %s17 = sshll.u32 [#allocation2], 4
      %s18 = int_to_ptr.vmem [resolvable:$true] %s17
      %23 = dma.hbm_to_vmem [thread:$0]  %s1, 1024, %s18, [#allocation3], 64, 64, 4
    $region9: #{_rnn_cell_forward.1} parent=1 // pred_fallthru
      _
    // Predicated region
    $region10: #{_rnn_cell_forward.1} parent=1 // pred_check
      _
    $region11: #{_rnn_cell_forward.1} parent=1 // pred_check_branch
      %25 = sbr.rel (0) target = $region13
    $region12: #{_rnn_cell_forward.1} parent=1 // pred_region
      _
    $region13: #{_rnn_cell_forward.1} parent=1 // pred_fallthru
      _
    // Predicated region
    $region14: #{_rnn_cell_forward.1} parent=1 // pred_check
      _
    $region15: #{_rnn_cell_forward.1} parent=1 // pred_check_branch
      %27 = sbr.rel (0) target = $region17
    $region16: #{_rnn_cell_forward.1} parent=1 // pred_region
      %28 = dma.done [#allocation3], 1024
    $region17: #{_rnn_cell_forward.1} parent=1 // pred_fallthru
      _
    %p30 = scmp.eq.s32.totalorder 0, 0
    // Predicated region
    $region18: #{_rnn_cell_forward.1} parent=1 // pred_check
      %p31 = pneg %p30
    $region19: #{_rnn_cell_forward.1} parent=1 // pred_check_branch
      %33 = sbr.rel (%p31) target = $region21
    $region20: #{_rnn_cell_forward.1} parent=1 // pred_region
      %34 = vst [vmem:[#allocation5] sm:$0xff] 0.0
    $region21: #{_rnn_cell_forward.1} parent=1 // pred_fallthru
      _
    %v35 = vld [vmem:[#allocation5] sm:$0xff]
    %v36 = vld [vmem:[%s0] sm:$0xf]
    %v37 = vld [vmem:[#allocation2] sm:$0xf]
    %v38 = vld [vmem:[#allocation2 + $0x4] sm:$0xf]
    %v39 = vld [vmem:[#allocation2 + $0x8] sm:$0xf]
    %v40 = vld [vmem:[#allocation2 + $0xc] sm:$0xf]
    %v41 = vld [vmem:[#allocation2 + $0x10] sm:$0xf]
    %v42 = vld [vmem:[#allocation2 + $0x14] sm:$0xf]
    %v43 = vld [vmem:[#allocation2 + $0x18] sm:$0xf]
    %v44 = vld [vmem:[#allocation2 + $0x1c] sm:$0xf]
    %v45 = vld [vmem:[#allocation2 + $0x20] sm:$0xf]
    %v46 = vld [vmem:[#allocation2 + $0x24] sm:$0xf]
    %v47 = vld [vmem:[#allocation2 + $0x28] sm:$0xf]
    %v48 = vld [vmem:[#allocation2 + $0x2c] sm:$0xf]
    %v49 = vld [vmem:[#allocation2 + $0x30] sm:$0xf]
    %v50 = vld [vmem:[#allocation2 + $0x34] sm:$0xf]
    %v51 = vld [vmem:[#allocation2 + $0x38] sm:$0xf]
    %v52 = vld [vmem:[#allocation2 + $0x3c] sm:$0xf]
    %v69 = vunpack.c.l.b16 %v37
    %v70 = vunpack.c.l.b16 %v38
    %v71 = vunpack.c.l.b16 %v39
    %v72 = vunpack.c.l.b16 %v40
    %v73 = vunpack.c.l.b16 %v41
    %v74 = vunpack.c.l.b16 %v42
    %v75 = vunpack.c.l.b16 %v43
    %v76 = vunpack.c.l.b16 %v44
    %v77 = vunpack.c.l.b16 %v45
    %v78 = vunpack.c.l.b16 %v46
    %v79 = vunpack.c.l.b16 %v47
    %v80 = vunpack.c.l.b16 %v48
    %v81 = vunpack.c.l.b16 %v49
    %v82 = vunpack.c.l.b16 %v50
    %v83 = vunpack.c.l.b16 %v51
    %v84 = vunpack.c.l.b16 %v52
    %v85 = vpack.c.b16 %v70, %v69
    %v86 = vpack.c.b16 %v72, %v71
    %v87 = vpack.c.b16 %v74, %v73
    %v88 = vpack.c.b16 %v76, %v75
    %v89 = vpack.c.b16 %v78, %v77
    %v90 = vpack.c.b16 %v80, %v79
    %v91 = vpack.c.b16 %v82, %v81
    %v92 = vpack.c.b16 %v84, %v83
    %101 = vmatprep.subr.bf16.mxu0 0
    %102 = vmatpush1.bf16.msra.mxu0 %v92
    %103 = vmatprep.subr.bf16.mxu0 0
    %104 = vmatpush1.bf16.msra.mxu0 %v91
    %105 = vmatprep.subr.bf16.mxu0 0
    %106 = vmatpush1.bf16.msra.mxu0 %v90
    %107 = vmatprep.subr.bf16.mxu0 0
    %108 = vmatpush1.bf16.msra.mxu0 %v89
    %109 = vmatprep.subr.bf16.mxu0 0
    %110 = vmatpush1.bf16.msra.mxu0 %v88
    %111 = vmatprep.subr.bf16.mxu0 0
    %112 = vmatpush1.bf16.msra.mxu0 %v87
    %113 = vmatprep.subr.bf16.mxu0 0
    %114 = vmatpush1.bf16.msra.mxu0 %v86
    %115 = vmatprep.subr.bf16.mxu0 0
    %116 = vmatpush1.bf16.msra.mxu0 %v85
    %117 = vmatprep.subr.bf16.mxu0 0
    %118 = vmatpush2.bf16.msra.mxu0 0
    %119 = vmatprep.subr.bf16.mxu0 0
    %120 = vmatpush2.bf16.msra.mxu0 0
    %121 = vmatprep.subr.bf16.mxu0 0
    %122 = vmatpush2.bf16.msra.mxu0 0
    %123 = vmatprep.subr.bf16.mxu0 0
    %124 = vmatpush2.bf16.msra.mxu0 0
    %125 = vmatprep.subr.bf16.mxu0 0
    %126 = vmatpush2.bf16.msra.mxu0 0
    %127 = vmatprep.subr.bf16.mxu0 0
    %128 = vmatpush2.bf16.msra.mxu0 0
    %129 = vmatprep.subr.bf16.mxu0 0
    %130 = vmatpush2.bf16.msra.mxu0 0
    %131 = vmatprep.subr.bf16.mxu0 0
    %132 = vmatpush2.bf16.msra.mxu0 0
    %133 = vmatprep.mubr.bf16.mxu0 0
    %134 = vmatmul.mubr.bf16.gmra.mxu0 %v36
    %v135 = vpop.f32.mrf.mxu0
    %v136 = vadd.f32 0.0, %v135
    %v137 = vpop.f32.mrf.mxu0
    %v138 = vpop.f32.mrf.mxu0
    %v139 = vpop.f32.mrf.mxu0
    %140 = vdwg.mxu0
    %v141 = vadd.f32 %v35, %v136
    %142 = vst [vmem:[#allocation5] sm:$0xff] %v141
    // Predicated region
    $region22: #{_rnn_cell_forward.1} parent=1 // pred_check
      %p143 = pneg %p30
    $region23: #{_rnn_cell_forward.1} parent=1 // pred_check_branch
      %145 = sbr.rel (%p143) target = $region25
    $region24: #{_rnn_cell_forward.1} parent=1 // pred_region
      %v146 = vld [vmem:[#allocation5] sm:$0xff]
      %v147 = vld [vmem:[%s2] sm:$0x1]
      %v149 = vlaneseq
      %v150 = vshrl.u32 %v149, 7
      %v151 = vsub.s32 0, %v150
      %v152 = vrot.slane %v147, %v151
      %v154 = vadd.f32 %v146, %v152
      %v155 = vtanh.pop %v154
      %156 = vst [vmem:[#allocation5] sm:$0xff] %v155
    $region25: #{_rnn_cell_forward.1} parent=1 // pred_fallthru
      _
    // Predicated region
    $region26: #{_rnn_cell_forward.1} parent=1 // pred_check
      _
    $region27: #{_rnn_cell_forward.1} parent=1 // pred_check_branch
      %158 = sbr.rel (0) target = $region29
    $region28: #{_rnn_cell_forward.1} parent=1 // pred_region
      %s160 = ssub.s32 128, 128
      %161 = vsyncadd [#allocation4], %s160
      %s163 = sshll.u32 [#allocation5], 4
      %s164 = int_to_ptr.vmem [resolvable:$true] %s163
      %166 = dma.vmem_to_hbm [thread:$0]  %s164, 128, %s3, [#allocation4]
    $region29: #{_rnn_cell_forward.1} parent=1 // pred_fallthru
      _
    // Predicated region
    $region30: #{_rnn_cell_forward.1} parent=1 // pred_check
      _
    $region31: #{_rnn_cell_forward.1} parent=1 // pred_check_branch
      %168 = sbr.rel (0) target = $region33
    $region32: #{_rnn_cell_forward.1} parent=1 // pred_region
      %169 = dma.done [#allocation4], 128
    $region33: #{_rnn_cell_forward.1} parent=1 // pred_fallthru
      _
    %170 = vsyncpa [#allocation3], 1
    %171 = vsyncpa [#allocation4], 1

</llo_original>
